<compile_context>
chip_gen: v7x
topology: tpu7x:2x2x1
jax: 0.10.0
libtpu: 0.0.40
codegen_flags: <defaults>
</compile_context>

<pallas_src>
import jax
import jax.numpy as jnp
from jax.experimental import pallas as pl
from jax.experimental.pallas import tpu as pltpu


def _round_up(x: int, m: int) -> int:
    return (x + m - 1) // m * m


# ----------------------------- Pallas kernel --------------------------------
def _patch_proj_kernel(patches_ref, w_ref, b_ref, out_ref):
    # patches: (tm, K) bf16, w: (K, N) bf16, b: (1, N) f32 -> out: (tm, N) f32
    acc = jnp.dot(patches_ref[...], w_ref[...],
                  preferred_element_type=jnp.float32)
    out_ref[...] = acc + b_ref[...]


def patch_projection_pallas(patches, weight, bias, *, tm_target=512):
    """patches: (M, K), weight: (K, N), bias: (N,)  ->  (M, N) float32.

    Tiles M with VMEM-resident (padded, bf16) weight; K/N padded to x128.
    """
    M, K = patches.shape
    Kw, N = weight.shape
    assert Kw == K

    # Lane-dense padding (zero padding preserves the matmul result).
    K_pad = _round_up(K, 128)
    N_pad = _round_up(N, 128)
    # Row tile: multiple of 8 sublanes, at most tm_target, M padded to a multiple.
    tm = min(tm_target, _round_up(M, 8))
    M_pad = _round_up(M, tm)

    patches_p = jnp.pad(patches, ((0, M_pad - M), (0, K_pad - K))).astype(jnp.bfloat16)
    weight_p = jnp.pad(weight, ((0, K_pad - K), (0, N_pad - N))).astype(jnp.bfloat16)
    bias_p = jnp.pad(bias.astype(jnp.float32), (0, N_pad - N)).reshape(1, N_pad)

    grid = (pl.cdiv(M_pad, tm),)

    # VMEM budget: double-buffered streaming tiles + resident weight/bias (+50% slack).
    vmem_bytes = (2 * tm * K_pad * 2      # patches tiles (bf16)
                  + 2 * tm * N_pad * 4    # output tiles (f32)
                  + 2 * K_pad * N_pad * 2 # weight (bf16), counted with headroom
                  + 2 * N_pad * 4)        # bias
    vmem_limit = min(64 * 1024 * 1024, max(32 * 1024 * 1024, int(vmem_bytes * 1.5)))

    out = pl.pallas_call(
        _patch_proj_kernel,
        out_shape=jax.ShapeDtypeStruct((M_pad, N_pad), jnp.float32),
        grid=grid,
        in_specs=[
            pl.BlockSpec((tm, K_pad), lambda i: (i, 0)),      # streamed row tile
            pl.BlockSpec((K_pad, N_pad), lambda i: (0, 0)),   # resident weight
            pl.BlockSpec((1, N_pad), lambda i: (0, 0)),       # resident bias
        ],
        out_specs=pl.BlockSpec((tm, N_pad), lambda i: (i, 0)),
        compiler_params=pltpu.CompilerParams(
            dimension_semantics=("parallel",),
            vmem_limit_bytes=vmem_limit,
        ),
        cost_estimate=pl.CostEstimate(
            flops=2 * M_pad * K_pad * N_pad,
            transcendentals=0,
            bytes_accessed=M_pad * K_pad * 2 + K_pad * N_pad * 2
                           + M_pad * N_pad * 4 + N_pad * 4,
        ),
    )(patches_p, weight_p, bias_p)

    return out[:M, :N]


# --------------------------- functional forward ------------------------------
def _vit_embeddings_forward(params, pixel_values):
    cls_token = params["cls_token"]             # (1, 1, hidden)
    pos_emb = params["position_embeddings"]     # (1, num_patches + 1, hidden)
    conv_w = params["conv_weight"]              # (hidden, C, P, P)
    conv_b = params["conv_bias"]                # (hidden,)

    hidden, C, P, _ = conv_w.shape
    B, Cx, H, W = pixel_values.shape
    assert Cx == C, "channel mismatch"
    hp, wp = H // P, W // P

    # Patch extraction: seq index = ph*wp + pw, inner feature order = (c, i, j).
    # (Kept inside the same jit so XLA fuses the reorder/cast/pad producers.)
    x = pixel_values.reshape(B, C, hp, P, wp, P)
    x = jnp.transpose(x, (0, 2, 4, 1, 3, 5))            # (B, hp, wp, C, P, P)
    patches = x.reshape(B * hp * wp, C * P * P)         # (M, K)

    # Conv2d weight (hidden, C, P, P) -> (K, hidden)
    w_mat = conv_w.reshape(hidden, C * P * P).T

    proj = patch_projection_pallas(patches, w_mat, conv_b)
    proj = proj.reshape(B, hp * wp, hidden)             # (B, num_patches, hidden)

    # CLS prepend stays as (jit-fused) XLA glue: the +1 row offset per batch is
    # not block-alignable for a BlockSpec output without Element-offset tricks.
    cls_tokens = jnp.broadcast_to(cls_token, (B, 1, hidden))
    embeddings = jnp.concatenate([cls_tokens, proj], axis=1)

    # TODO(synk): bool_masked_pos / mask_token path and bicubic
    # interpolate_pos_encoding are not implemented (reference defaults used).
    return embeddings, pos_emb


_vit_embeddings_forward_jit = jax.jit(_vit_embeddings_forward)


# ----------------------------- Module wrapper --------------------------------
class ViTEmbeddingsPallas:
    def __init__(self, key, image_size=16, patch_size=4, num_channels=4, hidden_size=32):
        self.image_size = (image_size, image_size)
        self.patch_size = (patch_size, patch_size)
        self.num_channels = num_channels
        self.hidden_size = hidden_size
        hp = image_size // patch_size
        wp = image_size // patch_size
        self.num_patches = hp * wp

        k_cls, k_pos, k_w, k_b = jax.random.split(key, 4)
        cls_token = jax.random.normal(k_cls, (1, 1, hidden_size), jnp.float32)
        position_embeddings = jax.random.normal(
            k_pos, (1, self.num_patches + 1, hidden_size), jnp.float32
        )
        # Conv2d(num_channels, hidden_size, kernel=patch, stride=patch) params.
        fan_in = num_channels * patch_size * patch_size
        bound = 1.0 / jnp.sqrt(fan_in)
        conv_weight = (
            jax.random.uniform(k_w, (hidden_size, num_channels, patch_size, patch_size),
                               jnp.float32, -1.0, 1.0) * bound
        )
        conv_bias = jax.random.uniform(k_b, (hidden_size,), jnp.float32, -1.0, 1.0) * bound

        self.params = {
            "cls_token": cls_token,
            "position_embeddings": position_embeddings,
            "conv_weight": conv_weight,
            "conv_bias": conv_bias,
        }

    def __call__(self, pixel_values):
        """pixel_values: (B, C, H, W) float32 -> (embeddings, pos_embedding)."""
        return _vit_embeddings_forward_jit(self.params, pixel_values)


# ----------------------------------- main ------------------------------------
if __name__ == "__main__":
    key = jax.random.PRNGKey(0)
    k_param, k_x = jax.random.split(key)

    B, C, H, W = 2, 4, 16, 16
    P = 4
    module = ViTEmbeddingsPallas(k_param, image_size=H, patch_size=P,
                                 num_channels=C, hidden_size=32)
    pixel_values = jax.random.normal(k_x, (B, C, H, W), jnp.float32)

    embeddings, pos_embedding = module(pixel_values)
    jax.block_until_ready(embeddings)
    jax.block_until_ready(pos_embedding)

    assert embeddings.shape == (B, module.num_patches + 1, module.hidden_size)
    assert pos_embedding.shape == (1, module.num_patches + 1, module.hidden_size)

    # Pure-JAX reference (f32 conv) to validate the conv-as-matmul kernel path.
    ref_proj = jax.lax.conv_general_dilated(
        pixel_values, module.params["conv_weight"],
        window_strides=(P, P), padding="VALID",
        dimension_numbers=("NCHW", "OIHW", "NCHW"),
    ) + module.params["conv_bias"][None, :, None, None]
    ref_proj = ref_proj.reshape(B, module.hidden_size, -1).transpose(0, 2, 1)
    ref_emb = jnp.concatenate(
        [jnp.broadcast_to(module.params["cls_token"], (B, 1, module.hidden_size)),
         ref_proj], axis=1)
    max_err = float(jnp.max(jnp.abs(embeddings - ref_emb)))
    assert max_err < 5e-2, f"mismatch vs reference: max_err={max_err}"

    print("KERNEL_OK")
</pallas_src>

<mosaic_0001>
module attributes {stable_mosaic.version = 11 : i64} {
  func.func @_patch_proj_kernel(%arg0: i32, %arg1: memref<32x128xbf16, #tpu.memory_space<vmem>>, %arg2: memref<128x128xbf16, #tpu.memory_space<vmem>>, %arg3: memref<1x128xf32, #tpu.memory_space<vmem>>, %arg4: memref<32x128xf32, #tpu.memory_space<vmem>>) attributes {dimension_semantics = [#tpu.dimension_semantics<parallel>], iteration_bounds = array<i64: 1>, scalar_prefetch = 0 : i64, scratch_operands = 0 : i64, tpu.core_type = #tpu.core_type<tc>, window_params = [{transform_indices = @transform_0, window_bounds = array<i64: 32, 128>}, {pipeline_mode = #tpu.pipeline_mode<synchronous>, transform_indices = @transform_1, window_bounds = array<i64: 128, 128>}, {pipeline_mode = #tpu.pipeline_mode<synchronous>, transform_indices = @transform_2, window_bounds = array<i64: 1, 128>}, {transform_indices = @transform_3, window_bounds = array<i64: 32, 128>}]} {
    %c0 = arith.constant 0 : index
    %c0_0 = arith.constant 0 : index
    %0 = vector.load %arg1[%c0, %c0_0] : memref<32x128xbf16, #tpu.memory_space<vmem>>, vector<32x128xbf16>
    %c0_1 = arith.constant 0 : index
    %c0_2 = arith.constant 0 : index
    %1 = vector.load %arg2[%c0_1, %c0_2] : memref<128x128xbf16, #tpu.memory_space<vmem>>, vector<128x128xbf16>
    %cst = arith.constant dense<0.000000e+00> : vector<32x128xf32>
    %2 = tpu.matmul %0, %1, %cst {dimension_numbers = #tpu.dot_dimension_numbers<[1], [0], [0], [1], [0, 0, 1, 1], [], []>} : vector<32x128xbf16>, vector<128x128xbf16>, vector<32x128xf32> -> vector<32x128xf32>
    %c0_3 = arith.constant 0 : index
    %c0_4 = arith.constant 0 : index
    %3 = vector.load %arg3[%c0_3, %c0_4] : memref<1x128xf32, #tpu.memory_space<vmem>>, vector<1x128xf32>
    %4 = vector.broadcast %3 : vector<1x128xf32> to vector<32x128xf32>
    %5 = arith.addf %2, %4 : vector<32x128xf32>
    %c0_5 = arith.constant 0 : index
    %c0_6 = arith.constant 0 : index
    %6 = vector.load %arg4[%c0_5, %c0_6] : memref<32x128xf32, #tpu.memory_space<vmem>>, vector<32x128xf32>
    tpu.vector_store %arg4[%c0_5, %c0_6], %5 {strides = array<i32>} : memref<32x128xf32, #tpu.memory_space<vmem>>, vector<32x128xf32>,
    return
  }
  func.func @transform_0(%arg0: i32) -> (i32, i32) {
    %c0_i32 = arith.constant 0 : i32
    %c0_i32_0 = arith.constant 0 : i32
    return %arg0, %c0_i32 : i32, i32
  }
  func.func @transform_1(%arg0: i32) -> (i32, i32) {
    %c0_i32 = arith.constant 0 : i32
    %c0_i32_0 = arith.constant 0 : i32
    %c0_i32_1 = arith.constant 0 : i32
    return %c0_i32, %c0_i32_0 : i32, i32
  }
  func.func @transform_2(%arg0: i32) -> (i32, i32) {
    %c0_i32 = arith.constant 0 : i32
    %c0_i32_0 = arith.constant 0 : i32
    %c0_i32_1 = arith.constant 0 : i32
    return %c0_i32, %c0_i32_0 : i32, i32
  }
  func.func @transform_3(%arg0: i32) -> (i32, i32) {
    %c0_i32 = arith.constant 0 : i32
    %c0_i32_0 = arith.constant 0 : i32
    return %arg0, %c0_i32 : i32, i32
  }
}

</mosaic_0001>

<llo_original>
// kernel: _vit_embeddings_forward.1
$region0: #{_vit_embeddings_forward.1}
  #allocation0 [shape = 'u32[]', space=smem, size = 0x4, offset = 0x4, fixed_abs, tag = 'smem constant byte address 0x4 - core index']
  #allocation1 [shape = 'u32[144,128]{1,0:T(1,128)}', space=vmem, size = 0x12000, scoped, tag = 'internal scratch']
  %s0 = inlined_call_operand.vmem [shape: bf16[32,128], index: 0, kind: input, shape index: {}]
  %s1 = inlined_call_operand.vmem [shape: bf16[128,128], index: 1, kind: input, shape index: {}]
  %s2 = inlined_call_operand.vmem [shape: f32[1,128], index: 2, kind: input, shape index: {}]
  %s3 = inlined_call_operand.vmem [shape: f32[32,128], index: 3, kind: output, shape index: {}]
  %s4 = sld [smem:[#allocation0]]
  $region22: #{_vit_embeddings_forward.1} parent=0
    _
  %s6 = ssub.s32 1, %s4
  %s7 = scalar_select 0, %s6, %s4
  // Predicated region
  $region2: #{_vit_embeddings_forward.1} parent=0 // pred_check
    _
  $region3: #{_vit_embeddings_forward.1} parent=0 // pred_check_branch
    %9 = sbr.rel (0) target = $region5
  $region4: #{_vit_embeddings_forward.1} parent=0 // pred_region
    _
  $region5: #{_vit_embeddings_forward.1} parent=0 // pred_fallthru
    _
  // Predicated region
  $region6: #{_vit_embeddings_forward.1} parent=0 // pred_check
    _
  $region7: #{_vit_embeddings_forward.1} parent=0 // pred_check_branch
    %11 = sbr.rel (0) target = $region9
  $region8: #{_vit_embeddings_forward.1} parent=0 // pred_region
    _
  $region9: #{_vit_embeddings_forward.1} parent=0 // pred_fallthru
    _
  // Predicated region
  $region10: #{_vit_embeddings_forward.1} parent=0 // pred_check
    _
  $region11: #{_vit_embeddings_forward.1} parent=0 // pred_check_branch
    %13 = sbr.rel (0) target = $region13
  $region12: #{_vit_embeddings_forward.1} parent=0 // pred_region
    _
  $region13: #{_vit_embeddings_forward.1} parent=0 // pred_fallthru
    _
  %v15 = vld [vmem:[%s0] sm:$0xf]
  %v16 = vld [vmem:[%s0 + $0x4] sm:$0xf]
  %v17 = vld [vmem:[%s0 + $0x8] sm:$0xf]
  %v18 = vld [vmem:[%s0 + $0xc] sm:$0xf]
  %v19 = vld [vmem:[%s1] sm:$0xf]
  %v20 = vld [vmem:[%s1 + $0x4] sm:$0xf]
  %v21 = vld [vmem:[%s1 + $0x8] sm:$0xf]
  %v22 = vld [vmem:[%s1 + $0xc] sm:$0xf]
  %v23 = vld [vmem:[%s1 + $0x10] sm:$0xf]
  %v24 = vld [vmem:[%s1 + $0x14] sm:$0xf]
  %v25 = vld [vmem:[%s1 + $0x18] sm:$0xf]
  %v26 = vld [vmem:[%s1 + $0x1c] sm:$0xf]
  %v27 = vld [vmem:[%s1 + $0x20] sm:$0xf]
  %v28 = vld [vmem:[%s1 + $0x24] sm:$0xf]
  %v29 = vld [vmem:[%s1 + $0x28] sm:$0xf]
  %v30 = vld [vmem:[%s1 + $0x2c] sm:$0xf]
  %v31 = vld [vmem:[%s1 + $0x30] sm:$0xf]
  %v32 = vld [vmem:[%s1 + $0x34] sm:$0xf]
  %v33 = vld [vmem:[%s1 + $0x38] sm:$0xf]
  %v34 = vld [vmem:[%s1 + $0x3c] sm:$0xf]
  %v35 = vld [vmem:[%s2] sm:$0x1]
  %v37 = vlaneseq
  %v38 = vshrl.u32 %v37, 7
  %v39 = vsub.s32 0, %v38
  %v40 = vrot.slane %v35, %v39
  %v46 = vunpack.c.l.b16 %v15
  %v47 = vunpack.c.l.b16 %v16
  %v48 = vunpack.c.l.b16 %v17
  %v49 = vunpack.c.l.b16 %v18
  %v50 = vpack.c.b16 %v47, %v46
  %v51 = vpack.c.b16 %v49, %v48
  %v70 = vunpack.c.l.b16 %v19
  %v71 = vunpack.c.l.b16 %v20
  %v72 = vunpack.c.l.b16 %v21
  %v73 = vunpack.c.l.b16 %v22
  %v74 = vunpack.c.l.b16 %v23
  %v75 = vunpack.c.l.b16 %v24
  %v76 = vunpack.c.l.b16 %v25
  %v77 = vunpack.c.l.b16 %v26
  %v78 = vunpack.c.l.b16 %v27
  %v79 = vunpack.c.l.b16 %v28
  %v80 = vunpack.c.l.b16 %v29
  %v81 = vunpack.c.l.b16 %v30
  %v82 = vunpack.c.l.b16 %v31
  %v83 = vunpack.c.l.b16 %v32
  %v84 = vunpack.c.l.b16 %v33
  %v85 = vunpack.c.l.b16 %v34
  %v86 = vpack.c.b16 %v71, %v70
  %v87 = vpack.c.b16 %v73, %v72
  %v88 = vpack.c.b16 %v75, %v74
  %v89 = vpack.c.b16 %v77, %v76
  %v90 = vpack.c.b16 %v79, %v78
  %v91 = vpack.c.b16 %v81, %v80
  %v92 = vpack.c.b16 %v83, %v82
  %v93 = vpack.c.b16 %v85, %v84
  %102 = vmatprep.subr.bf16.mxu0 0
  %103 = vmatpush1.bf16.msra.mxu0 %v86
  %104 = vmatprep.subr.bf16.mxu0 0
  %105 = vmatpush1.bf16.msra.mxu0 %v87
  %106 = vmatprep.subr.bf16.mxu0 0
  %107 = vmatpush1.bf16.msra.mxu0 %v88
  %108 = vmatprep.subr.bf16.mxu0 0
  %109 = vmatpush1.bf16.msra.mxu0 %v89
  %110 = vmatprep.subr.bf16.mxu0 0
  %111 = vmatpush1.bf16.msra.mxu0 %v90
  %112 = vmatprep.subr.bf16.mxu0 0
  %113 = vmatpush1.bf16.msra.mxu0 %v91
  %114 = vmatprep.subr.bf16.mxu0 0
  %115 = vmatpush1.bf16.msra.mxu0 %v92
  %116 = vmatprep.subr.bf16.mxu0 0
  %117 = vmatpush1.bf16.msra.mxu0 %v93
  %118 = vmatprep.subr.bf16.mxu0 0
  %119 = vmatpush1.bf16.msra.mxu0 0
  %120 = vmatprep.subr.bf16.mxu0 0
  %121 = vmatpush1.bf16.msra.mxu0 0
  %122 = vmatprep.subr.bf16.mxu0 0
  %123 = vmatpush1.bf16.msra.mxu0 0
  %124 = vmatprep.subr.bf16.mxu0 0
  %125 = vmatpush1.bf16.msra.mxu0 0
  %126 = vmatprep.subr.bf16.mxu0 0
  %127 = vmatpush1.bf16.msra.mxu0 0
  %128 = vmatprep.subr.bf16.mxu0 0
  %129 = vmatpush1.bf16.msra.mxu0 0
  %130 = vmatprep.subr.bf16.mxu0 0
  %131 = vmatpush1.bf16.msra.mxu0 0
  %132 = vmatprep.subr.bf16.mxu0 0
  %133 = vmatpush1.bf16.msra.mxu0 0
  %134 = vmatprep.mubr.bf16.mxu0 0
  %135 = vmatmul.mubr.bf16.gmra.mrb[0].mxu0 %v50
  %v136 = vpop.f32.mrb[0].mxu0
  %v137 = vadd.f32 %v40, %v136
  %v138 = vpop.f32.mrb[0].mxu0
  %v139 = vpop.f32.mrb[0].mxu0
  %v140 = vadd.f32 %v40, %v139
  %v141 = vpop.f32.mrb[0].mxu0
  %142 = vmatprep.mubr.bf16.mxu0 0
  %143 = vmatmul.mubr.bf16.gmra.mrb[0].mxu0 %v51
  %v144 = vpop.f32.mrb[0].mxu0
  %v145 = vadd.f32 %v40, %v144
  %v146 = vpop.f32.mrb[0].mxu0
  %v147 = vpop.f32.mrb[0].mxu0
  %v148 = vadd.f32 %v40, %v147
  %v149 = vpop.f32.mrb[0].mxu0
  %150 = vdwg.mxu0
  %151 = vst [vmem:[%s3] sm:$0xff] %v137
  %152 = vst [vmem:[%s3 + $0x8] sm:$0xff] %v140
  %153 = vst [vmem:[%s3 + $0x10] sm:$0xff] %v145
  %154 = vst [vmem:[%s3 + $0x18] sm:$0xff] %v148
  // Predicated region
  $region14: #{_vit_embeddings_forward.1} parent=0 // pred_check
    _
  $region15: #{_vit_embeddings_forward.1} parent=0 // pred_check_branch
    %156 = sbr.rel (0) target = $region17
  $region16: #{_vit_embeddings_forward.1} parent=0 // pred_region
    _
  $region17: #{_vit_embeddings_forward.1} parent=0 // pred_fallthru
    _
  // Predicated region
  $region18: #{_vit_embeddings_forward.1} parent=0 // pred_check
    _
  $region19: #{_vit_embeddings_forward.1} parent=0 // pred_check_branch
    %158 = sbr.rel (0) target = $region21
  $region20: #{_vit_embeddings_forward.1} parent=0 // pred_region
    _
  $region21: #{_vit_embeddings_forward.1} parent=0 // pred_fallthru
    _

</llo_original>
